<compile_context>
chip_gen: v7x
topology: tpu7x:2x2x1
jax: 0.10.0
libtpu: 0.0.40
codegen_flags: <defaults>
</compile_context>

<pallas_src>
import jax
import jax.numpy as jnp
from jax import lax
from jax.experimental import pallas as pl
from jax.experimental.pallas import tpu as pltpu

HIDDEN = 50   # hidden width of nn.Linear(2, 50)
FEAT = 2      # state dimension
CHUNK = 512   # in-kernel strip-mine width (lanes)


def _round_up(x, m):
    return ((x + m - 1) // m) * m


def cubic_ode_kernel(y_ref, w1_ref, b1_ref, w2_ref, b2_ref, o_ref):
    # y_ref / o_ref: (2, tb)  -- batch on the 128-lane axis.
    tb = y_ref.shape[-1]
    chunk = min(CHUNK, tb)          # wrapper guarantees tb % chunk == 0
    n_chunks = tb // chunk

    # Hoist lane-splats of the weights/biases out of the chunk loop
    # (JAX does not CSE broadcast_in_dim; do each broadcast once per grid step).
    w1c0 = jnp.broadcast_to(w1_ref[:, 0:1], (HIDDEN, chunk))   # (50, chunk)
    w1c1 = jnp.broadcast_to(w1_ref[:, 1:2], (HIDDEN, chunk))   # (50, chunk)
    b1b = jnp.broadcast_to(b1_ref[...], (HIDDEN, chunk))       # (50, chunk)
    b2b = jnp.broadcast_to(b2_ref[...], (FEAT, chunk))         # (2, chunk)
    w2 = w2_ref[...]                                           # (2, 50)

    def body(c, carry):
        start = pl.multiple_of(c * chunk, chunk)
        y = y_ref[:, pl.ds(start, chunk)]                      # (2, chunk)
        y3 = y * y * y                                         # exact cube on the VPU

        # Linear(2 -> 50) as a VPU broadcast-MAC (K=2 is too small for the MXU):
        #   h[j, b] = w1[j, 0] * y3[0, b] + w1[j, 1] * y3[1, b] + b1[j]
        h = jnp.tanh(w1c0 * y3[0:1, :] + w1c1 * y3[1:2, :] + b1b)   # (50, chunk)

        # Linear(50 -> 2) on the MXU with lane-dense N = chunk: (2,50) @ (50,chunk)
        out = jnp.dot(w2, h, preferred_element_type=jnp.float32) + b2b
        o_ref[:, pl.ds(start, chunk)] = out.astype(o_ref.dtype)
        return carry

    lax.fori_loop(0, n_chunks, body, 0, unroll=True)


def cubic_ode_func_T(t, yT, w1, b1, w2, b2, *, tb=8192):
    """Batch-on-lanes forward: yT is (2, B) f32, returns (2, B) f32.

    Use this entry point inside an ODE solver to keep the state in (2, B)
    layout across the whole time loop (no per-eval transposes / padding).
    `t` is unused (kept for signature parity with the PyTorch module).
    """
    del t
    B = yT.shape[-1]

    # Tile sizing:
    #  * multiple of 128 (lane width); multiple of CHUNK when > CHUNK so the
    #    in-kernel strip-mining divides evenly;
    #  * capped at ~B/2 so large batches keep >= 2 grid steps (v7x megacore).
    if B <= CHUNK:
        tb_eff = _round_up(B, 128)
    else:
        half = _round_up(pl.cdiv(B, 2), CHUNK)
        tb_eff = max(CHUNK, min(_round_up(tb, CHUNK), half))
    n_tiles = pl.cdiv(B, tb_eff)

    yT = yT.astype(jnp.float32)
    w1c = w1.astype(jnp.float32)                      # (50, 2)
    b1c = b1.reshape(HIDDEN, 1).astype(jnp.float32)   # (50, 1)
    w2c = w2.astype(jnp.float32)                      # (2, 50)
    b2c = b2.reshape(FEAT, 1).astype(jnp.float32)     # (2, 1)

    return pl.pallas_call(
        cubic_ode_kernel,
        out_shape=jax.ShapeDtypeStruct((FEAT, B), jnp.float32),
        grid=(n_tiles,),
        in_specs=[
            pl.BlockSpec((FEAT, tb_eff), lambda i: (0, i)),      # y tile (batch on lanes)
            pl.BlockSpec((HIDDEN, FEAT), lambda i: (0, 0)),      # w1: VMEM-resident
            pl.BlockSpec((HIDDEN, 1), lambda i: (0, 0)),         # b1: VMEM-resident
            pl.BlockSpec((FEAT, HIDDEN), lambda i: (0, 0)),      # w2: VMEM-resident
            pl.BlockSpec((FEAT, 1), lambda i: (0, 0)),           # b2: VMEM-resident
        ],
        out_specs=pl.BlockSpec((FEAT, tb_eff), lambda i: (0, i)),
        compiler_params=pltpu.CompilerParams(
            dimension_semantics=("parallel",),        # shard batch tiles across TCs (v7x)
            vmem_limit_bytes=32 * 1024 * 1024,        # tiny footprint; safe on v7x 64 MiB
        ),
    )(yT, w1c, b1c, w2c, b2c)


def cubic_ode_func(t, y, w1, b1, w2, b2, *, tb=8192):
    """PyTorch-signature forward: y is (B, 2), returns (B, 2).

    One transpose in / one transpose out; no zero-pad round trip (Pallas
    handles the ragged last batch tile).
    """
    outT = cubic_ode_func_T(t, jnp.asarray(y, jnp.float32).T, w1, b1, w2, b2, tb=tb)
    return outT.T


def init_params(key):
    """Deterministic init matching nn.init.normal_(std=0.1) / zero biases."""
    k1, k2 = jax.random.split(key)
    w1 = jax.random.normal(k1, (HIDDEN, FEAT), jnp.float32) * 0.1   # (50, 2)
    b1 = jnp.zeros((HIDDEN,), jnp.float32)
    w2 = jax.random.normal(k2, (FEAT, HIDDEN), jnp.float32) * 0.1   # (2, 50)
    b2 = jnp.zeros((FEAT,), jnp.float32)
    return w1, b1, w2, b2


def _reference(y, w1, b1, w2, b2):
    # Same math as nn.Sequential(Linear(2,50), Tanh, Linear(50,2)) on y**3.
    return jnp.tanh((y ** 3) @ w1.T + b1) @ w2.T + b2


if __name__ == "__main__":
    key = jax.random.PRNGKey(0)
    kp, ky1, ky2 = jax.random.split(key, 3)
    w1, b1, w2, b2 = init_params(kp)
    t = jnp.float32(0.0)  # unused, kept for signature parity

    # Small batch: single tile, single chunk, ragged (B < 128) read/write path.
    B1 = 8
    y1 = jax.random.normal(ky1, (B1, FEAT), jnp.float32)
    out1 = jax.block_until_ready(cubic_ode_func(t, y1, w1, b1, w2, b2))
    ref1 = _reference(y1, w1, b1, w2, b2)
    assert out1.shape == (B1, FEAT)
    assert jnp.allclose(out1, ref1, atol=1e-5, rtol=1e-5)

    # Larger batch: exercises multi-tile grid, in-kernel chunk loop, and the
    # ragged last tile (1100 = 1024 + 76).
    B2 = 1100
    y2 = jax.random.normal(ky2, (B2, FEAT), jnp.float32)
    out2 = jax.block_until_ready(cubic_ode_func(t, y2, w1, b1, w2, b2))
    ref2 = _reference(y2, w1, b1, w2, b2)
    assert out2.shape == (B2, FEAT)
    assert jnp.allclose(out2, ref2, atol=1e-5, rtol=1e-5)

    print("KERNEL_OK")
</pallas_src>

<mosaic_0001>
module attributes {stable_mosaic.version = 11 : i64} {
  func.func @cubic_ode_kernel(%arg0: i32, %arg1: memref<2x128xf32, #tpu.memory_space<vmem>>, %arg2: memref<50x2xf32, #tpu.memory_space<vmem>>, %arg3: memref<50x1xf32, #tpu.memory_space<vmem>>, %arg4: memref<2x50xf32, #tpu.memory_space<vmem>>, %arg5: memref<2x1xf32, #tpu.memory_space<vmem>>, %arg6: memref<2x128xf32, #tpu.memory_space<vmem>>) attributes {dimension_semantics = [#tpu.dimension_semantics<parallel>], iteration_bounds = array<i64: 1>, scalar_prefetch = 0 : i64, scratch_operands = 0 : i64, tpu.core_type = #tpu.core_type<tc>, window_params = [{transform_indices = @transform_0, window_bounds = array<i64: 2, 128>}, {pipeline_mode = #tpu.pipeline_mode<synchronous>, transform_indices = @transform_1, window_bounds = array<i64: 50, 2>}, {pipeline_mode = #tpu.pipeline_mode<synchronous>, transform_indices = @transform_2, window_bounds = array<i64: 50, 1>}, {pipeline_mode = #tpu.pipeline_mode<synchronous>, transform_indices = @transform_3, window_bounds = array<i64: 2, 50>}, {pipeline_mode = #tpu.pipeline_mode<synchronous>, transform_indices = @transform_4, window_bounds = array<i64: 2, 1>}, {transform_indices = @transform_5, window_bounds = array<i64: 2, 128>}]} {
    %c0 = arith.constant 0 : index
    %c0_0 = arith.constant 0 : index
    %0 = vector.load %arg2[%c0, %c0_0] : memref<50x2xf32, #tpu.memory_space<vmem>>, vector<50x1xf32>
    %1 = vector.shape_cast %0 : vector<50x1xf32> to vector<50x1xf32>
    %2 = vector.broadcast %1 : vector<50x1xf32> to vector<50x128xf32>
    %c0_1 = arith.constant 0 : index
    %c1 = arith.constant 1 : index
    %3 = vector.load %arg2[%c0_1, %c1] : memref<50x2xf32, #tpu.memory_space<vmem>>, vector<50x1xf32>
    %4 = vector.shape_cast %3 : vector<50x1xf32> to vector<50x1xf32>
    %5 = vector.broadcast %4 : vector<50x1xf32> to vector<50x128xf32>
    %c0_2 = arith.constant 0 : index
    %c0_3 = arith.constant 0 : index
    %6 = vector.load %arg3[%c0_2, %c0_3] : memref<50x1xf32, #tpu.memory_space<vmem>>, vector<50x1xf32>
    %7 = vector.shape_cast %6 : vector<50x1xf32> to vector<50x1xf32>
    %8 = vector.broadcast %7 : vector<50x1xf32> to vector<50x128xf32>
    %c0_4 = arith.constant 0 : index
    %c0_5 = arith.constant 0 : index
    %9 = vector.load %arg5[%c0_4, %c0_5] : memref<2x1xf32, #tpu.memory_space<vmem>>, vector<2x1xf32>
    %10 = vector.shape_cast %9 : vector<2x1xf32> to vector<2x1xf32>
    %11 = vector.broadcast %10 : vector<2x1xf32> to vector<2x128xf32>
    %c0_6 = arith.constant 0 : index
    %c0_7 = arith.constant 0 : index
    %12 = vector.load %arg4[%c0_6, %c0_7] : memref<2x50xf32, #tpu.memory_space<vmem>>, vector<2x50xf32>
    %c0_i32 = arith.constant 0 : i32
    %c128_i32 = arith.constant 128 : i32
    %13 = arith.muli %c0_i32, %c128_i32 : i32
    %14 = tpu.assume_multiple %13, 128 : i32
    %c0_8 = arith.constant 0 : index
    %15 = arith.index_cast %14 : i32 to index
    %16 = vector.load %arg1[%c0_8, %15] : memref<2x128xf32, #tpu.memory_space<vmem>>, vector<2x128xf32>
    %17 = arith.mulf %16, %16 : vector<2x128xf32>
    %18 = arith.mulf %17, %16 : vector<2x128xf32>
    %19 = vector.extract_strided_slice %18 {offsets = [0, 0], sizes = [1, 128], strides = [1, 1]} : vector<2x128xf32> to vector<1x128xf32>
    %20 = vector.broadcast %19 : vector<1x128xf32> to vector<50x128xf32>
    %21 = arith.mulf %2, %20 : vector<50x128xf32>
    %22 = vector.extract_strided_slice %18 {offsets = [1, 0], sizes = [1, 128], strides = [1, 1]} : vector<2x128xf32> to vector<1x128xf32>
    %23 = vector.broadcast %22 : vector<1x128xf32> to vector<50x128xf32>
    %24 = arith.mulf %5, %23 : vector<50x128xf32>
    %25 = arith.addf %21, %24 : vector<50x128xf32>
    %26 = arith.addf %25, %8 : vector<50x128xf32>
    %27 = math.tanh %26 : vector<50x128xf32>
    %cst = arith.constant dense<0.000000e+00> : vector<2x128xf32>
    %28 = tpu.matmul %12, %27, %cst {dimension_numbers = #tpu.dot_dimension_numbers<[1], [0], [0], [1], [0, 0, 1, 1], [], []>} : vector<2x50xf32>, vector<50x128xf32>, vector<2x128xf32> -> vector<2x128xf32>
    %29 = arith.addf %28, %11 : vector<2x128xf32>
    %c0_9 = arith.constant 0 : index
    %30 = arith.index_cast %14 : i32 to index
    %31 = vector.load %arg6[%c0_9, %30] : memref<2x128xf32, #tpu.memory_space<vmem>>, vector<2x128xf32>
    tpu.vector_store %arg6[%c0_9, %30], %29 {strides = array<i32>} : memref<2x128xf32, #tpu.memory_space<vmem>>, vector<2x128xf32>,
    %c1_i32 = arith.constant 1 : i32
    return
  }
  func.func @transform_0(%arg0: i32) -> (i32, i32) {
    %c0_i32 = arith.constant 0 : i32
    %c0_i32_0 = arith.constant 0 : i32
    return %c0_i32, %arg0 : i32, i32
  }
  func.func @transform_1(%arg0: i32) -> (i32, i32) {
    %c0_i32 = arith.constant 0 : i32
    %c0_i32_0 = arith.constant 0 : i32
    %c0_i32_1 = arith.constant 0 : i32
    return %c0_i32, %c0_i32_0 : i32, i32
  }
  func.func @transform_2(%arg0: i32) -> (i32, i32) {
    %c0_i32 = arith.constant 0 : i32
    %c0_i32_0 = arith.constant 0 : i32
    %c0_i32_1 = arith.constant 0 : i32
    return %c0_i32, %c0_i32_0 : i32, i32
  }
  func.func @transform_3(%arg0: i32) -> (i32, i32) {
    %c0_i32 = arith.constant 0 : i32
    %c0_i32_0 = arith.constant 0 : i32
    %c0_i32_1 = arith.constant 0 : i32
    return %c0_i32, %c0_i32_0 : i32, i32
  }
  func.func @transform_4(%arg0: i32) -> (i32, i32) {
    %c0_i32 = arith.constant 0 : i32
    %c0_i32_0 = arith.constant 0 : i32
    %c0_i32_1 = arith.constant 0 : i32
    return %c0_i32, %c0_i32_0 : i32, i32
  }
  func.func @transform_5(%arg0: i32) -> (i32, i32) {
    %c0_i32 = arith.constant 0 : i32
    %c0_i32_0 = arith.constant 0 : i32
    return %c0_i32, %arg0 : i32, i32
  }
}

</mosaic_0001>

<llo_original>
// kernel: tpu_custom_call.1
$region0: #{tpu_custom_call.1}
  #allocation0 [shape = 'u32[]', space=smem, size = 0x4, offset = 0x4, fixed_abs, tag = 'smem constant byte address 0x4 - core index']
  #allocation1 [shape = 'u32[144,128]{1,0:T(1,128)}', space=vmem, size = 0x12000, scoped, tag = 'internal scratch']
  %s0 = inlined_call_operand.vmem [shape: f32[2,8], index: 0, kind: input, shape index: {}]
  %s1 = inlined_call_operand.vmem [shape: f32[50,2], index: 1, kind: input, shape index: {}]
  %s2 = inlined_call_operand.vmem [shape: f32[50,1], index: 2, kind: input, shape index: {}]
  %s3 = inlined_call_operand.vmem [shape: f32[2,50], index: 3, kind: input, shape index: {}]
  %s4 = inlined_call_operand.vmem [shape: f32[2,1], index: 4, kind: input, shape index: {}]
  %s5 = inlined_call_operand.hbm [shape: f32[2,8], index: 5, kind: output, shape index: {}]
  %s6 = sld [smem:[#allocation0]]
  $region30: #{tpu_custom_call.1} parent=0
    _
  %s8 = ssub.s32 1, %s6
  %s9 = scalar_select 0, %s8, %s6
  $region1: #{tpu_custom_call.1} parent=0
    #allocation2 [shape = 'u8[1024]{0}', space=vmem, size = 0x400, scoped, tag = 'output window, operand 0, single buffered']
    #allocation3 [shape = 's32[1]{0}', space=sflag, size = 0x4, scoped, tag = 'scoped memory for tpu_custom_call.1']
    %10 = vsyncpa [#allocation3], 0
    // Predicated region
    $region2: #{tpu_custom_call.1} parent=1 // pred_check
      _
    $region3: #{tpu_custom_call.1} parent=1 // pred_check_branch
      %12 = sbr.rel (0) target = $region5
    $region4: #{tpu_custom_call.1} parent=1 // pred_region
      _
    $region5: #{tpu_custom_call.1} parent=1 // pred_fallthru
      _
    // Predicated region
    $region6: #{tpu_custom_call.1} parent=1 // pred_check
      _
    $region7: #{tpu_custom_call.1} parent=1 // pred_check_branch
      %14 = sbr.rel (0) target = $region9
    $region8: #{tpu_custom_call.1} parent=1 // pred_region
      _
    $region9: #{tpu_custom_call.1} parent=1 // pred_fallthru
      _
    // Predicated region
    $region10: #{tpu_custom_call.1} parent=1 // pred_check
      _
    $region11: #{tpu_custom_call.1} parent=1 // pred_check_branch
      %16 = sbr.rel (0) target = $region13
    $region12: #{tpu_custom_call.1} parent=1 // pred_region
      _
    $region13: #{tpu_custom_call.1} parent=1 // pred_fallthru
      _
    // Predicated region
    $region14: #{tpu_custom_call.1} parent=1 // pred_check
      _
    $region15: #{tpu_custom_call.1} parent=1 // pred_check_branch
      %18 = sbr.rel (0) target = $region17
    $region16: #{tpu_custom_call.1} parent=1 // pred_region
      _
    $region17: #{tpu_custom_call.1} parent=1 // pred_fallthru
      _
    // Predicated region
    $region18: #{tpu_custom_call.1} parent=1 // pred_check
      _
    $region19: #{tpu_custom_call.1} parent=1 // pred_check_branch
      %20 = sbr.rel (0) target = $region21
    $region20: #{tpu_custom_call.1} parent=1 // pred_region
      _
    $region21: #{tpu_custom_call.1} parent=1 // pred_fallthru
      _
    %v21 = vld [vmem:[%s1] sm:$0xff]
    %v22 = vld [vmem:[%s1 + $0x8] sm:$0xff]
    %v23 = vld [vmem:[%s1 + $0x10] sm:$0xff]
    %v24 = vld [vmem:[%s1 + $0x18] sm:$0xff]
    %v25 = vld [vmem:[%s1 + $0x20] sm:$0xff]
    %v26 = vld [vmem:[%s1 + $0x28] sm:$0xff]
    %v27 = vld [vmem:[%s1 + $0x30] sm:$0x3]
    %29 = vset.pattern.permute.xlu0 0
    %30 = vperm.xlu0 %29, %v21
    %v31 = vpop.permute.xlu0 %30
    %34 = vset.pattern.permute.xlu0 0
    %35 = vperm.xlu0 %34, %v22
    %v36 = vpop.permute.xlu0 %35
    %39 = vset.pattern.permute.xlu0 0
    %40 = vperm.xlu0 %39, %v23
    %v41 = vpop.permute.xlu0 %40
    %44 = vset.pattern.permute.xlu0 0
    %45 = vperm.xlu0 %44, %v24
    %v46 = vpop.permute.xlu0 %45
    %49 = vset.pattern.permute.xlu0 0
    %50 = vperm.xlu0 %49, %v25
    %v51 = vpop.permute.xlu0 %50
    %54 = vset.pattern.permute.xlu0 0
    %55 = vperm.xlu0 %54, %v26
    %v56 = vpop.permute.xlu0 %55
    %59 = vset.pattern.permute.xlu0 0
    %60 = vperm.xlu0 %59, %v27
    %v61 = vpop.permute.xlu0 %60
    %63 = vset.pattern.permute.xlu0 1
    %64 = vperm.xlu0 %63, %v21
    %v65 = vpop.permute.xlu0 %64
    %67 = vset.pattern.permute.xlu0 1
    %68 = vperm.xlu0 %67, %v22
    %v69 = vpop.permute.xlu0 %68
    %71 = vset.pattern.permute.xlu0 1
    %72 = vperm.xlu0 %71, %v23
    %v73 = vpop.permute.xlu0 %72
    %75 = vset.pattern.permute.xlu0 1
    %76 = vperm.xlu0 %75, %v24
    %v77 = vpop.permute.xlu0 %76
    %79 = vset.pattern.permute.xlu0 1
    %80 = vperm.xlu0 %79, %v25
    %v81 = vpop.permute.xlu0 %80
    %83 = vset.pattern.permute.xlu0 1
    %84 = vperm.xlu0 %83, %v26
    %v85 = vpop.permute.xlu0 %84
    %87 = vset.pattern.permute.xlu0 1
    %88 = vperm.xlu0 %87, %v27
    %v89 = vpop.permute.xlu0 %88
    %v91 = vld [vmem:[%s2] sm:$0xff]
    %v92 = vld [vmem:[%s2 + $0x8] sm:$0xff]
    %v93 = vld [vmem:[%s2 + $0x10] sm:$0xff]
    %v94 = vld [vmem:[%s2 + $0x18] sm:$0xff]
    %v95 = vld [vmem:[%s2 + $0x20] sm:$0xff]
    %v96 = vld [vmem:[%s2 + $0x28] sm:$0xff]
    %v97 = vld [vmem:[%s2 + $0x30] sm:$0x3]
    %99 = vset.pattern.permute.xlu0 0
    %100 = vperm.xlu0 %99, %v91
    %v101 = vpop.permute.xlu0 %100
    %104 = vset.pattern.permute.xlu0 0
    %105 = vperm.xlu0 %104, %v92
    %v106 = vpop.permute.xlu0 %105
    %109 = vset.pattern.permute.xlu0 0
    %110 = vperm.xlu0 %109, %v93
    %v111 = vpop.permute.xlu0 %110
    %114 = vset.pattern.permute.xlu0 0
    %115 = vperm.xlu0 %114, %v94
    %v116 = vpop.permute.xlu0 %115
    %119 = vset.pattern.permute.xlu0 0
    %120 = vperm.xlu0 %119, %v95
    %v121 = vpop.permute.xlu0 %120
    %124 = vset.pattern.permute.xlu0 0
    %125 = vperm.xlu0 %124, %v96
    %v126 = vpop.permute.xlu0 %125
    %129 = vset.pattern.permute.xlu0 0
    %130 = vperm.xlu0 %129, %v97
    %v131 = vpop.permute.xlu0 %130
    %v133 = vld [vmem:[%s4] sm:$0x3]
    %135 = vset.pattern.permute.xlu0 0
    %136 = vperm.xlu0 %135, %v133
    %v137 = vpop.permute.xlu0 %136
    %v139 = vld [vmem:[%s3] sm:$0x3]
    %v140 = vld [vmem:[%s0] sm:$0x3]
    %v141 = vmul.f32 %v140, %v140
    %v142 = vmul.f32 %v141, %v140
    %v143 = vlaneseq
    %v144 = vshrl.u32 %v143, 7
    %v145 = vsub.s32 0, %v144
    %v146 = vrot.slane %v142, %v145
    %v147 = vmul.f32 %v31, %v146
    %v148 = vmul.f32 %v36, %v146
    %v149 = vmul.f32 %v41, %v146
    %v150 = vmul.f32 %v46, %v146
    %v151 = vmul.f32 %v51, %v146
    %v152 = vmul.f32 %v56, %v146
    %v153 = vmul.f32 %v61, %v146
    %v154 = vlaneseq
    %v155 = vshrl.u32 %v154, 7
    %v156 = vsub.s32 1, %v155
    %v157 = vrot.slane %v142, %v156
    %v158 = vmul.f32 %v65, %v157
    %v159 = vmul.f32 %v69, %v157
    %v160 = vmul.f32 %v73, %v157
    %v161 = vmul.f32 %v77, %v157
    %v162 = vmul.f32 %v81, %v157
    %v163 = vmul.f32 %v85, %v157
    %v164 = vmul.f32 %v89, %v157
    %v165 = vadd.f32 %v147, %v158
    %v166 = vadd.f32 %v148, %v159
    %v167 = vadd.f32 %v149, %v160
    %v168 = vadd.f32 %v150, %v161
    %v169 = vadd.f32 %v151, %v162
    %v170 = vadd.f32 %v152, %v163
    %v171 = vadd.f32 %v153, %v164
    %v172 = vadd.f32 %v165, %v101
    %v173 = vadd.f32 %v166, %v106
    %v174 = vadd.f32 %v167, %v111
    %v175 = vadd.f32 %v168, %v116
    %v176 = vadd.f32 %v169, %v121
    %v177 = vadd.f32 %v170, %v126
    %v178 = vadd.f32 %v171, %v131
    %v179 = vtanh.pop %v172
    %v180 = vtanh.pop %v173
    %v181 = vtanh.pop %v174
    %v182 = vtanh.pop %v175
    %v183 = vtanh.pop %v176
    %v184 = vtanh.pop %v177
    %v185 = vtanh.pop %v178
    %vm186 = vcmask 408576
    %v188 = vsel %vm186, %v139, 0
    %vm190 = vcmask 1041408
    %v192 = vsel %vm190, %v185, 0
    %194 = vmatprep.subr.mxu0 0.0
    %195 = vmatpush1.msra.mxu0 %v179
    %196 = vmatprep.subr.mxu0 0.0
    %197 = vmatpush1.msra.mxu0 %v180
    %198 = vmatprep.subr.mxu0 0.0
    %199 = vmatpush1.msra.mxu0 %v181
    %200 = vmatprep.subr.mxu0 0.0
    %201 = vmatpush1.msra.mxu0 %v182
    %202 = vmatprep.subr.mxu0 0.0
    %203 = vmatpush1.msra.mxu0 %v183
    %204 = vmatprep.subr.mxu0 0.0
    %205 = vmatpush1.msra.mxu0 %v184
    %206 = vmatprep.subr.mxu0 0.0
    %207 = vmatpush1.msra.mxu0 %v192
    %208 = vmatprep.subr.mxu0 0.0
    %209 = vmatpush1.msra.mxu0 0.0
    %210 = vmatprep.subr.mxu0 0.0
    %211 = vmatpush1.msra.mxu0 0.0
    %212 = vmatprep.subr.mxu0 0.0
    %213 = vmatpush1.msra.mxu0 0.0
    %214 = vmatprep.subr.mxu0 0.0
    %215 = vmatpush1.msra.mxu0 0.0
    %216 = vmatprep.subr.mxu0 0.0
    %217 = vmatpush1.msra.mxu0 0.0
    %218 = vmatprep.subr.mxu0 0.0
    %219 = vmatpush1.msra.mxu0 0.0
    %220 = vmatprep.subr.mxu0 0.0
    %221 = vmatpush1.msra.mxu0 0.0
    %222 = vmatprep.subr.mxu0 0.0
    %223 = vmatpush1.msra.mxu0 0.0
    %224 = vmatprep.subr.mxu0 0.0
    %225 = vmatpush1.msra.mxu0 0.0
    %226 = vmatprep.subr.mxu0 0.0
    %227 = vmatpush1.msra.mxu0 0.0
    %228 = vmatprep.subr.mxu0 0.0
    %229 = vmatpush1.msra.mxu0 0.0
    %230 = vmatprep.subr.mxu0 0.0
    %231 = vmatpush1.msra.mxu0 0.0
    %232 = vmatprep.subr.mxu0 0.0
    %233 = vmatpush1.msra.mxu0 0.0
    %234 = vmatprep.subr.mxu0 0.0
    %235 = vmatpush1.msra.mxu0 0.0
    %236 = vmatprep.subr.mxu0 0.0
    %237 = vmatpush1.msra.mxu0 0.0
    %238 = vmatprep.subr.mxu0 0.0
    %239 = vmatpush1.msra.mxu0 0.0
    %240 = vmatprep.subr.mxu0 0.0
    %241 = vmatpush1.msra.mxu0 0.0
    %242 = vmatprep.subr.mxu0 0.0
    %243 = vmatpush1.msra.mxu0 0.0
    %244 = vmatprep.subr.mxu0 0.0
    %245 = vmatpush1.msra.mxu0 0.0
    %246 = vmatprep.subr.mxu0 0.0
    %247 = vmatpush1.msra.mxu0 0.0
    %248 = vmatprep.subr.mxu0 0.0
    %249 = vmatpush1.msra.mxu0 0.0
    %250 = vmatprep.subr.mxu0 0.0
    %251 = vmatpush1.msra.mxu0 0.0
    %252 = vmatprep.subr.mxu0 0.0
    %253 = vmatpush1.msra.mxu0 0.0
    %254 = vmatprep.subr.mxu0 0.0
    %255 = vmatpush1.msra.mxu0 0.0
    %256 = vmatprep.subr.mxu0 0.0
    %257 = vmatpush1.msra.mxu0 0.0
    %258 = vmatprep.mubr.f32.mxu0 0.0
    %259 = vmatmul.mubr.f32.gmra.mrb[0].mxu0 %v188
    %v260 = vpop.f32.mrb[0].mxu0
    %v261 = vadd.f32 %v137, %v260
    %v262 = vpop.f32.mrb[0].mxu0
    %263 = vdwg.mxu0
    %264 = vst [vmem:[#allocation2] sm:$0x3] %v261
    // Predicated region
    $region22: #{tpu_custom_call.1} parent=1 // pred_check
      _
    $region23: #{tpu_custom_call.1} parent=1 // pred_check_branch
      %266 = sbr.rel (0) target = $region25
    $region24: #{tpu_custom_call.1} parent=1 // pred_region
      %s268 = ssub.s32 32, 32
      %269 = vsyncadd [#allocation3], %s268
      %s271 = sshll.u32 [#allocation2], 4
      %s272 = int_to_ptr.vmem [resolvable:$true] %s271
      %274 = dma.vmem_to_hbm [thread:$0]  %s272, 32, %s5, [#allocation3]
    $region25: #{tpu_custom_call.1} parent=1 // pred_fallthru
      _
    // Predicated region
    $region26: #{tpu_custom_call.1} parent=1 // pred_check
      _
    $region27: #{tpu_custom_call.1} parent=1 // pred_check_branch
      %276 = sbr.rel (0) target = $region29
    $region28: #{tpu_custom_call.1} parent=1 // pred_region
      %277 = dma.done [#allocation3], 32
    $region29: #{tpu_custom_call.1} parent=1 // pred_fallthru
      _
    %278 = vsyncpa [#allocation3], 1

</llo_original>
